<compile_context>
chip_gen: v7x
topology: tpu7x:2x2x1
jax: 0.10.0
libtpu: 0.0.40
codegen_flags: <defaults>
</compile_context>

<pallas_src>
import functools

import jax
import jax.numpy as jnp
from jax import lax
from jax.experimental import pallas as pl
from jax.experimental.pallas import tpu as pltpu


def _hrm_user_kernel(g_ref, o_ref, *, n_rows, feat):
    # g_ref: (TB, n_rows*feat) gathered embedding rows (user bags ++ seq bags),
    #        fields-major within each `feat`-wide chunk.
    # o_ref: (TB, feat) L2-normalized pooled user embedding.
    x = g_ref[...]
    # Bag-sum (pooling_type_layer_1='sum') + layer-2 sum over the 2 branches:
    # both collapse into one reduction over the n_rows = 2*L gathered rows.
    # Static, lane-aligned (128-multiple) slices -> pure vreg-column adds.
    h = x[:, 0:feat]
    for j in range(1, n_rows):
        h = h + x[:, j * feat:(j + 1) * feat]
    # F.normalize: h / max(||h||, 1e-12)  ==  h * rsqrt(max(||h||^2, 1e-24))
    sq = jnp.sum(h * h, axis=-1, keepdims=True)                 # cross-lane reduce (XLU)
    inv = lax.rsqrt(jnp.maximum(sq, jnp.float32(1e-24)))        # EUP rsqrt (free slot)
    o_ref[...] = h * inv


def _pick_batch_tile(batch, target=256):
    # Largest divisor of `batch` that is <= target and sublane-aligned (mult of 8),
    # falling back to the full batch (block == array extent is always legal).
    for bt in range(min(batch, target), 0, -1):
        if batch % bt == 0 and (bt % 8 == 0 or bt == batch):
            return bt
    return batch


def hrm_user_pallas(gathered, *, feat, batch_tile):
    """gathered: (B, n_rows*feat) f32. Returns (B, feat) f32 normalized embedding."""
    B, R = gathered.shape
    assert R % feat == 0 and B % batch_tile == 0
    n_rows = R // feat
    grid = (B // batch_tile,)

    kernel = functools.partial(_hrm_user_kernel, n_rows=n_rows, feat=feat)
    return pl.pallas_call(
        kernel,
        out_shape=jax.ShapeDtypeStruct((B, feat), jnp.float32),
        grid_spec=pl.GridSpec(
            grid=grid,
            in_specs=[pl.BlockSpec((batch_tile, R), lambda i: (i, 0))],
            out_specs=pl.BlockSpec((batch_tile, feat), lambda i: (i, 0)),
        ),
        compiler_params=pltpu.CompilerParams(
            dimension_semantics=("parallel",),      # megacore-sharded batch axis
            vmem_limit_bytes=48 * 1024 * 1024,      # headroom; safe on v5e/v6e/v7x
        ),
    )(gathered)


def hrm_user_forward(x_ids, user_table, seq_table, *, batch_tile=None):
    """x_ids: (B, F, L) int32 sparse ids; user/seq tables: (V, E) f32.

    Returns (B, F*E) f32 == F.normalize(user_bagsum_concat + seq_bagsum_concat).
    """
    B, F, L = x_ids.shape
    V, E = user_table.shape
    feat = F * E
    if batch_tile is None:
        batch_tile = _pick_batch_tile(B)

    # Glue: one fused gather producing a lane-dense (B, 2L, F, E) slab, flattened
    # to (B, 2L * F*E).  Fields-major (F then E) within each chunk matches the
    # torch concat order.
    # TODO(synk): ms.EmbeddingSumConcat's feature hashing + FTRL updater has no
    # Pallas equivalent; the lookup is modeled as a plain table gather.  Fusing
    # the gather itself into the kernel (scalar-prefetched ids + table in
    # VMEM/HBM) would cut HBM traffic further but needs a robust in-kernel
    # gather path for real vocab sizes.
    tables = jnp.concatenate([user_table, seq_table], axis=0)      # (2V, E)
    x_t = jnp.swapaxes(x_ids, 1, 2)                                # (B, L, F)
    ids = jnp.concatenate([x_t, x_t + V], axis=1)                  # (B, 2L, F)
    gathered = tables[ids].reshape(B, 2 * L * feat)                # (B, 2L*F*E)

    return hrm_user_pallas(gathered, feat=feat, batch_tile=batch_tile)


def reference_forward(x_ids, user_table, seq_table):
    u = jnp.sum(user_table[x_ids], axis=2)                         # (B, F, E) bag-sum
    s = jnp.sum(seq_table[x_ids], axis=2)
    h = (u + s).reshape(x_ids.shape[0], -1)                        # concat fields
    norm = jnp.sqrt(jnp.sum(h * h, axis=1, keepdims=True))
    return h / jnp.maximum(norm, 1e-12)


if __name__ == "__main__":
    # Small synthetic shapes consistent with the module; F*E = 128 -> exact lane width.
    B = 512          # batch (batch_tile=256 -> grid of 2 parallel steps)
    F = 4            # sparse fields per combine schema
    L = 3            # ids per bag (per field)
    E = 32           # embedding_dim
    V = 100          # vocab size (hashed id space)

    key = jax.random.PRNGKey(0)
    k_ids, k_user, k_seq = jax.random.split(key, 3)

    # NormalTensorInitializer(var=1e-4) -> std=1e-2
    std = jnp.sqrt(jnp.float32(1e-4))
    user_table = std * jax.random.normal(k_user, (V, E), dtype=jnp.float32)
    seq_table = std * jax.random.normal(k_seq, (V, E), dtype=jnp.float32)

    # Sparse feature ids "x": (B, F, L) int32
    x = jax.random.randint(k_ids, (B, F, L), 0, V, dtype=jnp.int32)

    fwd = jax.jit(hrm_user_forward)
    out = jax.block_until_ready(fwd(x, user_table, seq_table))

    ref = reference_forward(x, user_table, seq_table)
    assert out.shape == (B, F * E)
    assert jnp.allclose(out, ref, atol=1e-5, rtol=1e-5), float(jnp.max(jnp.abs(out - ref)))

    print("KERNEL_OK")
</pallas_src>

<mosaic_0001>
module attributes {stable_mosaic.version = 11 : i64} {
  func.func @_hrm_user_kernel(%arg0: i32, %arg1: memref<256x768xf32, #tpu.memory_space<vmem>>, %arg2: memref<256x128xf32, #tpu.memory_space<vmem>>) attributes {dimension_semantics = [#tpu.dimension_semantics<parallel>], iteration_bounds = array<i64: 2>, scalar_prefetch = 0 : i64, scratch_operands = 0 : i64, tpu.core_type = #tpu.core_type<tc>, window_params = [{transform_indices = @transform_0, window_bounds = array<i64: 256, 768>}, {transform_indices = @transform_1, window_bounds = array<i64: 256, 128>}]} {
    %c0 = arith.constant 0 : index
    %c0_0 = arith.constant 0 : index
    %0 = vector.load %arg1[%c0, %c0_0] : memref<256x768xf32, #tpu.memory_space<vmem>>, vector<256x768xf32>
    %1 = vector.extract_strided_slice %0 {offsets = [0, 0], sizes = [256, 128], strides = [1, 1]} : vector<256x768xf32> to vector<256x128xf32>
    %2 = vector.extract_strided_slice %0 {offsets = [0, 128], sizes = [256, 128], strides = [1, 1]} : vector<256x768xf32> to vector<256x128xf32>
    %3 = arith.addf %1, %2 : vector<256x128xf32>
    %4 = vector.extract_strided_slice %0 {offsets = [0, 256], sizes = [256, 128], strides = [1, 1]} : vector<256x768xf32> to vector<256x128xf32>
    %5 = arith.addf %3, %4 : vector<256x128xf32>
    %6 = vector.extract_strided_slice %0 {offsets = [0, 384], sizes = [256, 128], strides = [1, 1]} : vector<256x768xf32> to vector<256x128xf32>
    %7 = arith.addf %5, %6 : vector<256x128xf32>
    %8 = vector.extract_strided_slice %0 {offsets = [0, 512], sizes = [256, 128], strides = [1, 1]} : vector<256x768xf32> to vector<256x128xf32>
    %9 = arith.addf %7, %8 : vector<256x128xf32>
    %10 = vector.extract_strided_slice %0 {offsets = [0, 640], sizes = [256, 128], strides = [1, 1]} : vector<256x768xf32> to vector<256x128xf32>
    %11 = arith.addf %9, %10 : vector<256x128xf32>
    %12 = arith.mulf %11, %11 : vector<256x128xf32>
    %cst = arith.constant dense<0.000000e+00> : vector<256xf32>
    %13 = vector.multi_reduction <add>, %12, %cst [1] : vector<256x128xf32> to vector<256xf32>
    %14 = vector.shape_cast %13 : vector<256xf32> to vector<256x1xf32>
    %cst_1 = arith.constant 1.000000e-24 : f32
    %15 = vector.broadcast %cst_1 : f32 to vector<256x1xf32>
    %16 = arith.maximumf %14, %15 : vector<256x1xf32>
    %17 = math.rsqrt %16 : vector<256x1xf32>
    %18 = vector.broadcast %17 : vector<256x1xf32> to vector<256x128xf32>
    %19 = arith.mulf %11, %18 : vector<256x128xf32>
    %c0_2 = arith.constant 0 : index
    %c0_3 = arith.constant 0 : index
    %20 = vector.load %arg2[%c0_2, %c0_3] : memref<256x128xf32, #tpu.memory_space<vmem>>, vector<256x128xf32>
    tpu.vector_store %arg2[%c0_2, %c0_3], %19 {strides = array<i32>} : memref<256x128xf32, #tpu.memory_space<vmem>>, vector<256x128xf32>,
    return
  }
  func.func @transform_0(%arg0: i32) -> (i32, i32) {
    %c0_i32 = arith.constant 0 : i32
    %c0_i32_0 = arith.constant 0 : i32
    return %arg0, %c0_i32 : i32, i32
  }
  func.func @transform_1(%arg0: i32) -> (i32, i32) {
    %c0_i32 = arith.constant 0 : i32
    %c0_i32_0 = arith.constant 0 : i32
    return %arg0, %c0_i32 : i32, i32
  }
}

</mosaic_0001>

<llo_original>
// kernel: hrm_user_forward.1
$region0: #{hrm_user_forward.1}
  #allocation0 [shape = 'u32[]', space=smem, size = 0x4, offset = 0x4, fixed_abs, tag = 'smem constant byte address 0x4 - core index']
  #allocation1 [shape = 'u32[144,128]{1,0:T(1,128)}', space=vmem, size = 0x12000, scoped, tag = 'internal scratch']
  %s0 = inlined_call_operand.vmem [shape: f32[512,768], index: 0, kind: input, shape index: {}]
  %s1 = inlined_call_operand.hbm [shape: f32[512,128], index: 1, kind: output, shape index: {}]
  %s2 = sld [smem:[#allocation0]]
  $region37: #{hrm_user_forward.1} parent=0
    _
  %s4 = ssub.s32 1, %s2
  %s5 = scalar_select 0, %s4, %s2
  $region1: #{hrm_user_forward.1} parent=0
    #allocation2 [shape = 'u8[262144]{0}', space=vmem, size = 0x40000, scoped, tag = 'output window, operand 0']
    #allocation3 [shape = 's32[2]{0}', space=sflag, size = 0x8, scoped, tag = 'scoped memory for hrm_user_forward.1']
    %6 = vsyncpa [#allocation3], 0
    %s7 = scalar_lea.sflag [#allocation3], 1
    %8 = vsyncpa %s7, 0
    loop: start=0, step=1, limit=4
    $region2: #{hrm_user_forward.1} parent=1 // loop_pre_header
      _
    $region3: #{hrm_user_forward.1} parent=1 // loop_header
      %s10 = sphi 0, %s14
      %p11 = scmp.ge.s32.totalorder %s10, 4
      %s20 = sphi 0, %s22
      %s23 = sphi 0, %s20
      %s24 = sphi 0, %s23
      %s40 = sphi 0, %s24
      %s46 = sphi 0, %s48
      %s49 = sphi 0, %s46
      %s50 = sphi 0, %s49
      %s66 = sphi 0, %s50
    $region4: #{hrm_user_forward.1} parent=1 // loop_header_branch
      %13 = sbr.rel (%p11) target = $region8
    $region5: #{hrm_user_forward.1} parent=1 // loop_body
      %s15 = ssub.s32 %s10, 1
      %s16 = ssub.s32 %s10, 2
      %s17 = sadd.s32 %s10, 1
      %s18 = ssub.s32 %s10, %s17
      %p19 = scmp.eq.s32.totalorder %s18, 0
      %s21 = sadd.s32 %s20, 1
      %s22 = scalar_select %p19, %s20, %s21
      %p25 = pneg %p19
      %p26 = scmp.eq.s32.totalorder %s10, 1
      %p27 = por %p25, %p26
      %p28 = scmp.ne.s32.totalorder %s20, %s23
      %p29 = scmp.eq.s32.totalorder %s10, 0
      %p30 = por %p28, %p29
      %p31 = scmp.ne.s32.totalorder %s20, %s23
      %p32 = scmp.eq.s32.totalorder %s15, 1
      %p33 = por %p31, %p32
      %p34 = scmp.ne.s32.totalorder %s23, %s24
      %p35 = scmp.eq.s32.totalorder %s15, 0
      %p36 = por %p34, %p35
      %p37 = scmp.ne.s32.totalorder %s23, %s24
      %p38 = scmp.eq.s32.totalorder %s16, 1
      %p39 = por %p37, %p38
      %p41 = scmp.ne.s32.totalorder %s24, %s40
      %p42 = scmp.eq.s32.totalorder %s16, 0
      %p43 = por %p41, %p42
      %s44 = ssub.s32 %s10, %s17
      %p45 = scmp.eq.s32.totalorder %s44, 0
      %s47 = sadd.s32 %s46, 1
      %s48 = scalar_select %p45, %s46, %s47
      %p51 = pneg %p45
      %p52 = scmp.eq.s32.totalorder %s10, 1
      %p53 = por %p51, %p52
      %p54 = scmp.ne.s32.totalorder %s46, %s49
      %p55 = scmp.eq.s32.totalorder %s10, 0
      %p56 = por %p54, %p55
      %p57 = scmp.ne.s32.totalorder %s46, %s49
      %p58 = scmp.eq.s32.totalorder %s15, 1
      %p59 = por %p57, %p58
      %p60 = scmp.ne.s32.totalorder %s49, %s50
      %p61 = scmp.eq.s32.totalorder %s15, 0
      %p62 = por %p60, %p61
      %p63 = scmp.ne.s32.totalorder %s49, %s50
      %p64 = scmp.eq.s32.totalorder %s16, 1
      %p65 = por %p63, %p64
      %p67 = scmp.ne.s32.totalorder %s50, %s66
      %p68 = scmp.eq.s32.totalorder %s16, 0
      %p69 = por %p67, %p68
      %p70 = scmp.le.s32.totalorder 1, %s10
      %p71 = scmp.lt.s32.totalorder %s10, 3
      %p72 = pnand %p70, %p71
      %p73 = pneg %p72
      // Predicated region
      $region9: #{hrm_user_forward.1} parent=5 // pred_check
        _
      $region10: #{hrm_user_forward.1} parent=5 // pred_check_branch
        %75 = sbr.rel (%p72) target = $region12
      $region11: #{hrm_user_forward.1} parent=5 // pred_region
        %s76 = ssub.s32 %s10, 1
      $region12: #{hrm_user_forward.1} parent=5 // pred_fallthru
        _
      %p77 = scmp.lt.s32.totalorder %s10, 2
      // Predicated region
      $region13: #{hrm_user_forward.1} parent=5 // pred_check
        %p78 = pneg %p77
      $region14: #{hrm_user_forward.1} parent=5 // pred_check_branch
        %80 = sbr.rel (%p78) target = $region16
      $region15: #{hrm_user_forward.1} parent=5 // pred_region
        // Predicated region
        $region17: #{hrm_user_forward.1} parent=15 // pred_check
          %p81 = pneg %p30
        $region18: #{hrm_user_forward.1} parent=15 // pred_check_branch
          %83 = sbr.rel (%p81) target = $region20
        $region19: #{hrm_user_forward.1} parent=15 // pred_region
          %s84 = smul.u32 32, %s10
          %p85 = scmp.lt.s32.totalorder %s84, 63
          %s86 = scalar_select %p85, %s84, 63
          %s87 = smul.addr %s86, 6
          %s88 = smul.addr %s87, 8
          %s89 = scalar_lea.vmem %s0, %s88
          %s90 = smul.u32 32, %s10
        $region20: #{hrm_user_forward.1} parent=15 // pred_fallthru
          _
      $region16: #{hrm_user_forward.1} parent=5 // pred_fallthru
        _
      %p91 = scmp.le.s32.totalorder 1, %s10
      %p92 = scmp.lt.s32.totalorder %s10, 3
      %p93 = pnand %p91, %p92
      %p94 = pneg %p93
      // Predicated region
      $region21: #{hrm_user_forward.1} parent=5 // pred_check
        _
      $region22: #{hrm_user_forward.1} parent=5 // pred_check_branch
        %96 = sbr.rel (%p93) target = $region24
      $region23: #{hrm_user_forward.1} parent=5 // pred_region
        %s97 = ssub.s32 %s10, 1
        %s98 = smul.u32 32, %s15
        %p99 = scmp.lt.s32.totalorder %s98, 63
        %s100 = scalar_select %p99, %s98, 63
        %s101 = smul.addr %s100, 6
        %s102 = smul.addr %s101, 8
        %s103 = scalar_lea.vmem %s0, %s102
        %p104 = pneg %p36
        %p105 = pneg %p33
        %p106 = pneg %p62
        %p107 = pneg %p59
        %s108 = sand.u32 %s49, 1
        %s109 = scalar_lea.sflag [#allocation3], %s108
        %s110 = sand.u32 %s49, 1
        %s111 = smul.addr %s110, 256
        %s112 = scalar_lea.vmem [#allocation2], %s111
        %s113 = smul.u32 32, %s15
        %p114 = scmp.lt.s32.totalorder %s113, 63
        %s115 = scalar_select %p114, %s113, 63
        %s116 = smul.addr %s115, 6
        %s117 = smul.addr %s116, 8
        %s118 = scalar_lea.vmem %s0, %s117
        %s119 = smul.u32 32, %s15
        %s120 = smul.u32 32, %s15
        %v121 = vld [vmem:[%s118] sm:$0xff]
        %v122 = vld [vmem:[%s118 + $0x8] sm:$0xff]
        %v123 = vld [vmem:[%s118 + $0x10] sm:$0xff]
        %v124 = vld [vmem:[%s118 + $0x18] sm:$0xff]
        %v125 = vld [vmem:[%s118 + $0x20] sm:$0xff]
        %v126 = vld [vmem:[%s118 + $0x28] sm:$0xff]
        %v127 = vld [vmem:[%s118 + $0x30] sm:$0xff]
        %v128 = vld [vmem:[%s118 + $0x38] sm:$0xff]
        %v129 = vld [vmem:[%s118 + $0x40] sm:$0xff]
        %v130 = vld [vmem:[%s118 + $0x48] sm:$0xff]
        %v131 = vld [vmem:[%s118 + $0x50] sm:$0xff]
        %v132 = vld [vmem:[%s118 + $0x58] sm:$0xff]
        %v133 = vld [vmem:[%s118 + $0x60] sm:$0xff]
        %v134 = vld [vmem:[%s118 + $0x68] sm:$0xff]
        %v135 = vld [vmem:[%s118 + $0x70] sm:$0xff]
        %v136 = vld [vmem:[%s118 + $0x78] sm:$0xff]
        %v137 = vld [vmem:[%s118 + $0x80] sm:$0xff]
        %v138 = vld [vmem:[%s118 + $0x88] sm:$0xff]
        %v139 = vld [vmem:[%s118 + $0x90] sm:$0xff]
        %v140 = vld [vmem:[%s118 + $0x98] sm:$0xff]
        %v141 = vld [vmem:[%s118 + $0xa0] sm:$0xff]
        %v142 = vld [vmem:[%s118 + $0xa8] sm:$0xff]
        %v143 = vld [vmem:[%s118 + $0xb0] sm:$0xff]
        %v144 = vld [vmem:[%s118 + $0xb8] sm:$0xff]
        %v145 = vld [vmem:[%s118 + $0xc0] sm:$0xff]
        %v146 = vld [vmem:[%s118 + $0xc8] sm:$0xff]
        %v147 = vld [vmem:[%s118 + $0xd0] sm:$0xff]
        %v148 = vld [vmem:[%s118 + $0xd8] sm:$0xff]
        %v149 = vld [vmem:[%s118 + $0xe0] sm:$0xff]
        %v150 = vld [vmem:[%s118 + $0xe8] sm:$0xff]
        %v151 = vld [vmem:[%s118 + $0xf0] sm:$0xff]
        %v152 = vld [vmem:[%s118 + $0xf8] sm:$0xff]
        %v153 = vld [vmem:[%s118 + $0x100] sm:$0xff]
        %v154 = vld [vmem:[%s118 + $0x108] sm:$0xff]
        %v155 = vld [vmem:[%s118 + $0x110] sm:$0xff]
        %v156 = vld [vmem:[%s118 + $0x118] sm:$0xff]
        %v157 = vld [vmem:[%s118 + $0x120] sm:$0xff]
        %v158 = vld [vmem:[%s118 + $0x128] sm:$0xff]
        %v159 = vld [vmem:[%s118 + $0x130] sm:$0xff]
        %v160 = vld [vmem:[%s118 + $0x138] sm:$0xff]
        %v161 = vld [vmem:[%s118 + $0x140] sm:$0xff]
        %v162 = vld [vmem:[%s118 + $0x148] sm:$0xff]
        %v163 = vld [vmem:[%s118 + $0x150] sm:$0xff]
        %v164 = vld [vmem:[%s118 + $0x158] sm:$0xff]
        %v165 = vld [vmem:[%s118 + $0x160] sm:$0xff]
        %v166 = vld [vmem:[%s118 + $0x168] sm:$0xff]
        %v167 = vld [vmem:[%s118 + $0x170] sm:$0xff]
        %v168 = vld [vmem:[%s118 + $0x178] sm:$0xff]
        %v169 = vld [vmem:[%s118 + $0x180] sm:$0xff]
        %v170 = vld [vmem:[%s118 + $0x188] sm:$0xff]
        %v171 = vld [vmem:[%s118 + $0x190] sm:$0xff]
        %v172 = vld [vmem:[%s118 + $0x198] sm:$0xff]
        %v173 = vld [vmem:[%s118 + $0x1a0] sm:$0xff]
        %v174 = vld [vmem:[%s118 + $0x1a8] sm:$0xff]
        %v175 = vld [vmem:[%s118 + $0x1b0] sm:$0xff]
        %v176 = vld [vmem:[%s118 + $0x1b8] sm:$0xff]
        %v177 = vld [vmem:[%s118 + $0x1c0] sm:$0xff]
        %v178 = vld [vmem:[%s118 + $0x1c8] sm:$0xff]
        %v179 = vld [vmem:[%s118 + $0x1d0] sm:$0xff]
        %v180 = vld [vmem:[%s118 + $0x1d8] sm:$0xff]
        %v181 = vld [vmem:[%s118 + $0x1e0] sm:$0xff]
        %v182 = vld [vmem:[%s118 + $0x1e8] sm:$0xff]
        %v183 = vld [vmem:[%s118 + $0x1f0] sm:$0xff]
        %v184 = vld [vmem:[%s118 + $0x1f8] sm:$0xff]
        %v185 = vld [vmem:[%s118 + $0x200] sm:$0xff]
        %v186 = vld [vmem:[%s118 + $0x208] sm:$0xff]
        %v187 = vld [vmem:[%s118 + $0x210] sm:$0xff]
        %v188 = vld [vmem:[%s118 + $0x218] sm:$0xff]
        %v189 = vld [vmem:[%s118 + $0x220] sm:$0xff]
        %v190 = vld [vmem:[%s118 + $0x228] sm:$0xff]
        %v191 = vld [vmem:[%s118 + $0x230] sm:$0xff]
        %v192 = vld [vmem:[%s118 + $0x238] sm:$0xff]
        %v193 = vld [vmem:[%s118 + $0x240] sm:$0xff]
        %v194 = vld [vmem:[%s118 + $0x248] sm:$0xff]
        %v195 = vld [vmem:[%s118 + $0x250] sm:$0xff]
        %v196 = vld [vmem:[%s118 + $0x258] sm:$0xff]
        %v197 = vld [vmem:[%s118 + $0x260] sm:$0xff]
        %v198 = vld [vmem:[%s118 + $0x268] sm:$0xff]
        %v199 = vld [vmem:[%s118 + $0x270] sm:$0xff]
        %v200 = vld [vmem:[%s118 + $0x278] sm:$0xff]
        %v201 = vld [vmem:[%s118 + $0x280] sm:$0xff]
        %v202 = vld [vmem:[%s118 + $0x288] sm:$0xff]
        %v203 = vld [vmem:[%s118 + $0x290] sm:$0xff]
        %v204 = vld [vmem:[%s118 + $0x298] sm:$0xff]
        %v205 = vld [vmem:[%s118 + $0x2a0] sm:$0xff]
        %v206 = vld [vmem:[%s118 + $0x2a8] sm:$0xff]
        %v207 = vld [vmem:[%s118 + $0x2b0] sm:$0xff]
        %v208 = vld [vmem:[%s118 + $0x2b8] sm:$0xff]
        %v209 = vld [vmem:[%s118 + $0x2c0] sm:$0xff]
        %v210 = vld [vmem:[%s118 + $0x2c8] sm:$0xff]
        %v211 = vld [vmem:[%s118 + $0x2d0] sm:$0xff]
        %v212 = vld [vmem:[%s118 + $0x2d8] sm:$0xff]
        %v213 = vld [vmem:[%s118 + $0x2e0] sm:$0xff]
        %v214 = vld [vmem:[%s118 + $0x2e8] sm:$0xff]
        %v215 = vld [vmem:[%s118 + $0x2f0] sm:$0xff]
        %v216 = vld [vmem:[%s118 + $0x2f8] sm:$0xff]
        %v217 = vld [vmem:[%s118 + $0x300] sm:$0xff]
        %v218 = vld [vmem:[%s118 + $0x308] sm:$0xff]
        %v219 = vld [vmem:[%s118 + $0x310] sm:$0xff]
        %v220 = vld [vmem:[%s118 + $0x318] sm:$0xff]
        %v221 = vld [vmem:[%s118 + $0x320] sm:$0xff]
        %v222 = vld [vmem:[%s118 + $0x328] sm:$0xff]
        %v223 = vld [vmem:[%s118 + $0x330] sm:$0xff]
        %v224 = vld [vmem:[%s118 + $0x338] sm:$0xff]
        %v225 = vld [vmem:[%s118 + $0x340] sm:$0xff]
        %v226 = vld [vmem:[%s118 + $0x348] sm:$0xff]
        %v227 = vld [vmem:[%s118 + $0x350] sm:$0xff]
        %v228 = vld [vmem:[%s118 + $0x358] sm:$0xff]
        %v229 = vld [vmem:[%s118 + $0x360] sm:$0xff]
        %v230 = vld [vmem:[%s118 + $0x368] sm:$0xff]
        %v231 = vld [vmem:[%s118 + $0x370] sm:$0xff]
        %v232 = vld [vmem:[%s118 + $0x378] sm:$0xff]
        %v233 = vld [vmem:[%s118 + $0x380] sm:$0xff]
        %v234 = vld [vmem:[%s118 + $0x388] sm:$0xff]
        %v235 = vld [vmem:[%s118 + $0x390] sm:$0xff]
        %v236 = vld [vmem:[%s118 + $0x398] sm:$0xff]
        %v237 = vld [vmem:[%s118 + $0x3a0] sm:$0xff]
        %v238 = vld [vmem:[%s118 + $0x3a8] sm:$0xff]
        %v239 = vld [vmem:[%s118 + $0x3b0] sm:$0xff]
        %v240 = vld [vmem:[%s118 + $0x3b8] sm:$0xff]
        %v241 = vld [vmem:[%s118 + $0x3c0] sm:$0xff]
        %v242 = vld [vmem:[%s118 + $0x3c8] sm:$0xff]
        %v243 = vld [vmem:[%s118 + $0x3d0] sm:$0xff]
        %v244 = vld [vmem:[%s118 + $0x3d8] sm:$0xff]
        %v245 = vld [vmem:[%s118 + $0x3e0] sm:$0xff]
        %v246 = vld [vmem:[%s118 + $0x3e8] sm:$0xff]
        %v247 = vld [vmem:[%s118 + $0x3f0] sm:$0xff]
        %v248 = vld [vmem:[%s118 + $0x3f8] sm:$0xff]
        %v249 = vld [vmem:[%s118 + $0x400] sm:$0xff]
        %v250 = vld [vmem:[%s118 + $0x408] sm:$0xff]
        %v251 = vld [vmem:[%s118 + $0x410] sm:$0xff]
        %v252 = vld [vmem:[%s118 + $0x418] sm:$0xff]
        %v253 = vld [vmem:[%s118 + $0x420] sm:$0xff]
        %v254 = vld [vmem:[%s118 + $0x428] sm:$0xff]
        %v255 = vld [vmem:[%s118 + $0x430] sm:$0xff]
        %v256 = vld [vmem:[%s118 + $0x438] sm:$0xff]
        %v257 = vld [vmem:[%s118 + $0x440] sm:$0xff]
        %v258 = vld [vmem:[%s118 + $0x448] sm:$0xff]
        %v259 = vld [vmem:[%s118 + $0x450] sm:$0xff]
        %v260 = vld [vmem:[%s118 + $0x458] sm:$0xff]
        %v261 = vld [vmem:[%s118 + $0x460] sm:$0xff]
        %v262 = vld [vmem:[%s118 + $0x468] sm:$0xff]
        %v263 = vld [vmem:[%s118 + $0x470] sm:$0xff]
        %v264 = vld [vmem:[%s118 + $0x478] sm:$0xff]
        %v265 = vld [vmem:[%s118 + $0x480] sm:$0xff]
        %v266 = vld [vmem:[%s118 + $0x488] sm:$0xff]
        %v267 = vld [vmem:[%s118 + $0x490] sm:$0xff]
        %v268 = vld [vmem:[%s118 + $0x498] sm:$0xff]
        %v269 = vld [vmem:[%s118 + $0x4a0] sm:$0xff]
        %v270 = vld [vmem:[%s118 + $0x4a8] sm:$0xff]
        %v271 = vld [vmem:[%s118 + $0x4b0] sm:$0xff]
        %v272 = vld [vmem:[%s118 + $0x4b8] sm:$0xff]
        %v273 = vld [vmem:[%s118 + $0x4c0] sm:$0xff]
        %v274 = vld [vmem:[%s118 + $0x4c8] sm:$0xff]
        %v275 = vld [vmem:[%s118 + $0x4d0] sm:$0xff]
        %v276 = vld [vmem:[%s118 + $0x4d8] sm:$0xff]
        %v277 = vld [vmem:[%s118 + $0x4e0] sm:$0xff]
        %v278 = vld [vmem:[%s118 + $0x4e8] sm:$0xff]
        %v279 = vld [vmem:[%s118 + $0x4f0] sm:$0xff]
        %v280 = vld [vmem:[%s118 + $0x4f8] sm:$0xff]
        %v281 = vld [vmem:[%s118 + $0x500] sm:$0xff]
        %v282 = vld [vmem:[%s118 + $0x508] sm:$0xff]
        %v283 = vld [vmem:[%s118 + $0x510] sm:$0xff]
        %v284 = vld [vmem:[%s118 + $0x518] sm:$0xff]
        %v285 = vld [vmem:[%s118 + $0x520] sm:$0xff]
        %v286 = vld [vmem:[%s118 + $0x528] sm:$0xff]
        %v287 = vld [vmem:[%s118 + $0x530] sm:$0xff]
        %v288 = vld [vmem:[%s118 + $0x538] sm:$0xff]
        %v289 = vld [vmem:[%s118 + $0x540] sm:$0xff]
        %v290 = vld [vmem:[%s118 + $0x548] sm:$0xff]
        %v291 = vld [vmem:[%s118 + $0x550] sm:$0xff]
        %v292 = vld [vmem:[%s118 + $0x558] sm:$0xff]
        %v293 = vld [vmem:[%s118 + $0x560] sm:$0xff]
        %v294 = vld [vmem:[%s118 + $0x568] sm:$0xff]
        %v295 = vld [vmem:[%s118 + $0x570] sm:$0xff]
        %v296 = vld [vmem:[%s118 + $0x578] sm:$0xff]
        %v297 = vld [vmem:[%s118 + $0x580] sm:$0xff]
        %v298 = vld [vmem:[%s118 + $0x588] sm:$0xff]
        %v299 = vld [vmem:[%s118 + $0x590] sm:$0xff]
        %v300 = vld [vmem:[%s118 + $0x598] sm:$0xff]
        %v301 = vld [vmem:[%s118 + $0x5a0] sm:$0xff]
        %v302 = vld [vmem:[%s118 + $0x5a8] sm:$0xff]
        %v303 = vld [vmem:[%s118 + $0x5b0] sm:$0xff]
        %v304 = vld [vmem:[%s118 + $0x5b8] sm:$0xff]
        %v305 = vld [vmem:[%s118 + $0x5c0] sm:$0xff]
        %v306 = vld [vmem:[%s118 + $0x5c8] sm:$0xff]
        %v307 = vld [vmem:[%s118 + $0x5d0] sm:$0xff]
        %v308 = vld [vmem:[%s118 + $0x5d8] sm:$0xff]
        %v309 = vld [vmem:[%s118 + $0x5e0] sm:$0xff]
        %v310 = vld [vmem:[%s118 + $0x5e8] sm:$0xff]
        %v311 = vld [vmem:[%s118 + $0x5f0] sm:$0xff]
        %v312 = vld [vmem:[%s118 + $0x5f8] sm:$0xff]
        %v313 = vadd.f32 %v121, %v122
        %v314 = vadd.f32 %v127, %v128
        %v315 = vadd.f32 %v133, %v134
        %v316 = vadd.f32 %v139, %v140
        %v317 = vadd.f32 %v145, %v146
        %v318 = vadd.f32 %v151, %v152
        %v319 = vadd.f32 %v157, %v158
        %v320 = vadd.f32 %v163, %v164
        %v321 = vadd.f32 %v169, %v170
        %v322 = vadd.f32 %v175, %v176
        %v323 = vadd.f32 %v181, %v182
        %v324 = vadd.f32 %v187, %v188
        %v325 = vadd.f32 %v193, %v194
        %v326 = vadd.f32 %v199, %v200
        %v327 = vadd.f32 %v205, %v206
        %v328 = vadd.f32 %v211, %v212
        %v329 = vadd.f32 %v217, %v218
        %v330 = vadd.f32 %v223, %v224
        %v331 = vadd.f32 %v229, %v230
        %v332 = vadd.f32 %v235, %v236
        %v333 = vadd.f32 %v241, %v242
        %v334 = vadd.f32 %v247, %v248
        %v335 = vadd.f32 %v253, %v254
        %v336 = vadd.f32 %v259, %v260
        %v337 = vadd.f32 %v265, %v266
        %v338 = vadd.f32 %v271, %v272
        %v339 = vadd.f32 %v277, %v278
        %v340 = vadd.f32 %v283, %v284
        %v341 = vadd.f32 %v289, %v290
        %v342 = vadd.f32 %v295, %v296
        %v343 = vadd.f32 %v301, %v302
        %v344 = vadd.f32 %v307, %v308
        %v345 = vadd.f32 %v313, %v123
        %v346 = vadd.f32 %v314, %v129
        %v347 = vadd.f32 %v315, %v135
        %v348 = vadd.f32 %v316, %v141
        %v349 = vadd.f32 %v317, %v147
        %v350 = vadd.f32 %v318, %v153
        %v351 = vadd.f32 %v319, %v159
        %v352 = vadd.f32 %v320, %v165
        %v353 = vadd.f32 %v321, %v171
        %v354 = vadd.f32 %v322, %v177
        %v355 = vadd.f32 %v323, %v183
        %v356 = vadd.f32 %v324, %v189
        %v357 = vadd.f32 %v325, %v195
        %v358 = vadd.f32 %v326, %v201
        %v359 = vadd.f32 %v327, %v207
        %v360 = vadd.f32 %v328, %v213
        %v361 = vadd.f32 %v329, %v219
        %v362 = vadd.f32 %v330, %v225
        %v363 = vadd.f32 %v331, %v231
        %v364 = vadd.f32 %v332, %v237
        %v365 = vadd.f32 %v333, %v243
        %v366 = vadd.f32 %v334, %v249
        %v367 = vadd.f32 %v335, %v255
        %v368 = vadd.f32 %v336, %v261
        %v369 = vadd.f32 %v337, %v267
        %v370 = vadd.f32 %v338, %v273
        %v371 = vadd.f32 %v339, %v279
        %v372 = vadd.f32 %v340, %v285
        %v373 = vadd.f32 %v341, %v291
        %v374 = vadd.f32 %v342, %v297
        %v375 = vadd.f32 %v343, %v303
        %v376 = vadd.f32 %v344, %v309
        %v377 = vadd.f32 %v345, %v124
        %v378 = vadd.f32 %v346, %v130
        %v379 = vadd.f32 %v347, %v136
        %v380 = vadd.f32 %v348, %v142
        %v381 = vadd.f32 %v349, %v148
        %v382 = vadd.f32 %v350, %v154
        %v383 = vadd.f32 %v351, %v160
        %v384 = vadd.f32 %v352, %v166
        %v385 = vadd.f32 %v353, %v172
        %v386 = vadd.f32 %v354, %v178
        %v387 = vadd.f32 %v355, %v184
        %v388 = vadd.f32 %v356, %v190
        %v389 = vadd.f32 %v357, %v196
        %v390 = vadd.f32 %v358, %v202
        %v391 = vadd.f32 %v359, %v208
        %v392 = vadd.f32 %v360, %v214
        %v393 = vadd.f32 %v361, %v220
        %v394 = vadd.f32 %v362, %v226
        %v395 = vadd.f32 %v363, %v232
        %v396 = vadd.f32 %v364, %v238
        %v397 = vadd.f32 %v365, %v244
        %v398 = vadd.f32 %v366, %v250
        %v399 = vadd.f32 %v367, %v256
        %v400 = vadd.f32 %v368, %v262
        %v401 = vadd.f32 %v369, %v268
        %v402 = vadd.f32 %v370, %v274
        %v403 = vadd.f32 %v371, %v280
        %v404 = vadd.f32 %v372, %v286
        %v405 = vadd.f32 %v373, %v292
        %v406 = vadd.f32 %v374, %v298
        %v407 = vadd.f32 %v375, %v304
        %v408 = vadd.f32 %v376, %v310
        %v409 = vadd.f32 %v377, %v125
        %v410 = vadd.f32 %v378, %v131
        %v411 = vadd.f32 %v379, %v137
        %v412 = vadd.f32 %v380, %v143
        %v413 = vadd.f32 %v381, %v149
        %v414 = vadd.f32 %v382, %v155
        %v415 = vadd.f32 %v383, %v161
        %v416 = vadd.f32 %v384, %v167
        %v417 = vadd.f32 %v385, %v173
        %v418 = vadd.f32 %v386, %v179
        %v419 = vadd.f32 %v387, %v185
        %v420 = vadd.f32 %v388, %v191
        %v421 = vadd.f32 %v389, %v197
        %v422 = vadd.f32 %v390, %v203
        %v423 = vadd.f32 %v391, %v209
        %v424 = vadd.f32 %v392, %v215
        %v425 = vadd.f32 %v393, %v221
        %v426 = vadd.f32 %v394, %v227
        %v427 = vadd.f32 %v395, %v233
        %v428 = vadd.f32 %v396, %v239
        %v429 = vadd.f32 %v397, %v245
        %v430 = vadd.f32 %v398, %v251
        %v431 = vadd.f32 %v399, %v257
        %v432 = vadd.f32 %v400, %v263
        %v433 = vadd.f32 %v401, %v269
        %v434 = vadd.f32 %v402, %v275
        %v435 = vadd.f32 %v403, %v281
        %v436 = vadd.f32 %v404, %v287
        %v437 = vadd.f32 %v405, %v293
        %v438 = vadd.f32 %v406, %v299
        %v439 = vadd.f32 %v407, %v305
        %v440 = vadd.f32 %v408, %v311
        %v441 = vadd.f32 %v409, %v126
        %v442 = vadd.f32 %v410, %v132
        %v443 = vadd.f32 %v411, %v138
        %v444 = vadd.f32 %v412, %v144
        %v445 = vadd.f32 %v413, %v150
        %v446 = vadd.f32 %v414, %v156
        %v447 = vadd.f32 %v415, %v162
        %v448 = vadd.f32 %v416, %v168
        %v449 = vadd.f32 %v417, %v174
        %v450 = vadd.f32 %v418, %v180
        %v451 = vadd.f32 %v419, %v186
        %v452 = vadd.f32 %v420, %v192
        %v453 = vadd.f32 %v421, %v198
        %v454 = vadd.f32 %v422, %v204
        %v455 = vadd.f32 %v423, %v210
        %v456 = vadd.f32 %v424, %v216
        %v457 = vadd.f32 %v425, %v222
        %v458 = vadd.f32 %v426, %v228
        %v459 = vadd.f32 %v427, %v234
        %v460 = vadd.f32 %v428, %v240
        %v461 = vadd.f32 %v429, %v246
        %v462 = vadd.f32 %v430, %v252
        %v463 = vadd.f32 %v431, %v258
        %v464 = vadd.f32 %v432, %v264
        %v465 = vadd.f32 %v433, %v270
        %v466 = vadd.f32 %v434, %v276
        %v467 = vadd.f32 %v435, %v282
        %v468 = vadd.f32 %v436, %v288
        %v469 = vadd.f32 %v437, %v294
        %v470 = vadd.f32 %v438, %v300
        %v471 = vadd.f32 %v439, %v306
        %v472 = vadd.f32 %v440, %v312
        %v473 = vmul.f32 %v441, %v441
        %v474 = vmul.f32 %v442, %v442
        %v475 = vmul.f32 %v443, %v443
        %v476 = vmul.f32 %v444, %v444
        %v477 = vmul.f32 %v445, %v445
        %v478 = vmul.f32 %v446, %v446
        %v479 = vmul.f32 %v447, %v447
        %v480 = vmul.f32 %v448, %v448
        %v481 = vmul.f32 %v449, %v449
        %v482 = vmul.f32 %v450, %v450
        %v483 = vmul.f32 %v451, %v451
        %v484 = vmul.f32 %v452, %v452
        %v485 = vmul.f32 %v453, %v453
        %v486 = vmul.f32 %v454, %v454
        %v487 = vmul.f32 %v455, %v455
        %v488 = vmul.f32 %v456, %v456
        %v489 = vmul.f32 %v457, %v457
        %v490 = vmul.f32 %v458, %v458
        %v491 = vmul.f32 %v459, %v459
        %v492 = vmul.f32 %v460, %v460
        %v493 = vmul.f32 %v461, %v461
        %v494 = vmul.f32 %v462, %v462
        %v495 = vmul.f32 %v463, %v463
        %v496 = vmul.f32 %v464, %v464
        %v497 = vmul.f32 %v465, %v465
        %v498 = vmul.f32 %v466, %v466
        %v499 = vmul.f32 %v467, %v467
        %v500 = vmul.f32 %v468, %v468
        %v501 = vmul.f32 %v469, %v469
        %v502 = vmul.f32 %v470, %v470
        %v503 = vmul.f32 %v471, %v471
        %v504 = vmul.f32 %v472, %v472
        %505 = vadd.xlane.f32.xlu0 %v473
        %v506 = vpop.xlane.xlu0 %505
        %507 = vadd.xlane.f32.xlu0 %v474
        %v508 = vpop.xlane.xlu0 %507
        %509 = vadd.xlane.f32.xlu0 %v475
        %v510 = vpop.xlane.xlu0 %509
        %511 = vadd.xlane.f32.xlu0 %v476
        %v512 = vpop.xlane.xlu0 %511
        %513 = vadd.xlane.f32.xlu0 %v477
        %v514 = vpop.xlane.xlu0 %513
        %515 = vadd.xlane.f32.xlu0 %v478
        %v516 = vpop.xlane.xlu0 %515
        %517 = vadd.xlane.f32.xlu0 %v479
        %v518 = vpop.xlane.xlu0 %517
        %519 = vadd.xlane.f32.xlu0 %v480
        %v520 = vpop.xlane.xlu0 %519
        %521 = vadd.xlane.f32.xlu0 %v481
        %v522 = vpop.xlane.xlu0 %521
        %523 = vadd.xlane.f32.xlu0 %v482
        %v524 = vpop.xlane.xlu0 %523
        %525 = vadd.xlane.f32.xlu0 %v483
        %v526 = vpop.xlane.xlu0 %525
        %527 = vadd.xlane.f32.xlu0 %v484
        %v528 = vpop.xlane.xlu0 %527
        %529 = vadd.xlane.f32.xlu0 %v485
        %v530 = vpop.xlane.xlu0 %529
        %531 = vadd.xlane.f32.xlu0 %v486
        %v532 = vpop.xlane.xlu0 %531
        %533 = vadd.xlane.f32.xlu0 %v487
        %v534 = vpop.xlane.xlu0 %533
        %535 = vadd.xlane.f32.xlu0 %v488
        %v536 = vpop.xlane.xlu0 %535
        %537 = vadd.xlane.f32.xlu0 %v489
        %v538 = vpop.xlane.xlu0 %537
        %539 = vadd.xlane.f32.xlu0 %v490
        %v540 = vpop.xlane.xlu0 %539
        %541 = vadd.xlane.f32.xlu0 %v491
        %v542 = vpop.xlane.xlu0 %541
        %543 = vadd.xlane.f32.xlu0 %v492
        %v544 = vpop.xlane.xlu0 %543
        %545 = vadd.xlane.f32.xlu0 %v493
        %v546 = vpop.xlane.xlu0 %545
        %547 = vadd.xlane.f32.xlu0 %v494
        %v548 = vpop.xlane.xlu0 %547
        %549 = vadd.xlane.f32.xlu0 %v495
        %v550 = vpop.xlane.xlu0 %549
        %551 = vadd.xlane.f32.xlu0 %v496
        %v552 = vpop.xlane.xlu0 %551
        %553 = vadd.xlane.f32.xlu0 %v497
        %v554 = vpop.xlane.xlu0 %553
        %555 = vadd.xlane.f32.xlu0 %v498
        %v556 = vpop.xlane.xlu0 %555
        %557 = vadd.xlane.f32.xlu0 %v499
        %v558 = vpop.xlane.xlu0 %557
        %559 = vadd.xlane.f32.xlu0 %v500
        %v560 = vpop.xlane.xlu0 %559
        %561 = vadd.xlane.f32.xlu0 %v501
        %v562 = vpop.xlane.xlu0 %561
        %563 = vadd.xlane.f32.xlu0 %v502
        %v564 = vpop.xlane.xlu0 %563
        %565 = vadd.xlane.f32.xlu0 %v503
        %v566 = vpop.xlane.xlu0 %565
        %567 = vadd.xlane.f32.xlu0 %v504
        %v568 = vpop.xlane.xlu0 %567
        %v569 = vmax.f32 %v506, 1e-24
        %v570 = vmax.f32 %v508, 1e-24
        %v571 = vmax.f32 %v510, 1e-24
        %v572 = vmax.f32 %v512, 1e-24
        %v573 = vmax.f32 %v514, 1e-24
        %v574 = vmax.f32 %v516, 1e-24
        %v575 = vmax.f32 %v518, 1e-24
        %v576 = vmax.f32 %v520, 1e-24
        %v577 = vmax.f32 %v522, 1e-24
        %v578 = vmax.f32 %v524, 1e-24
        %v579 = vmax.f32 %v526, 1e-24
        %v580 = vmax.f32 %v528, 1e-24
        %v581 = vmax.f32 %v530, 1e-24
        %v582 = vmax.f32 %v532, 1e-24
        %v583 = vmax.f32 %v534, 1e-24
        %v584 = vmax.f32 %v536, 1e-24
        %v585 = vmax.f32 %v538, 1e-24
        %v586 = vmax.f32 %v540, 1e-24
        %v587 = vmax.f32 %v542, 1e-24
        %v588 = vmax.f32 %v544, 1e-24
        %v589 = vmax.f32 %v546, 1e-24
        %v590 = vmax.f32 %v548, 1e-24
        %v591 = vmax.f32 %v550, 1e-24
        %v592 = vmax.f32 %v552, 1e-24
        %v593 = vmax.f32 %v554, 1e-24
        %v594 = vmax.f32 %v556, 1e-24
        %v595 = vmax.f32 %v558, 1e-24
        %v596 = vmax.f32 %v560, 1e-24
        %v597 = vmax.f32 %v562, 1e-24
        %v598 = vmax.f32 %v564, 1e-24
        %v599 = vmax.f32 %v566, 1e-24
        %v600 = vmax.f32 %v568, 1e-24
        %v601 = vrsqrt.pop %v569
        %v602 = vrsqrt.pop %v570
        %v603 = vrsqrt.pop %v571
        %v604 = vrsqrt.pop %v572
        %v605 = vrsqrt.pop %v573
        %v606 = vrsqrt.pop %v574
        %v607 = vrsqrt.pop %v575
        %v608 = vrsqrt.pop %v576
        %v609 = vrsqrt.pop %v577
        %v610 = vrsqrt.pop %v578
        %v611 = vrsqrt.pop %v579
        %v612 = vrsqrt.pop %v580
        %v613 = vrsqrt.pop %v581
        %v614 = vrsqrt.pop %v582
        %v615 = vrsqrt.pop %v583
        %v616 = vrsqrt.pop %v584
        %v617 = vrsqrt.pop %v585
        %v618 = vrsqrt.pop %v586
        %v619 = vrsqrt.pop %v587
        %v620 = vrsqrt.pop %v588
        %v621 = vrsqrt.pop %v589
        %v622 = vrsqrt.pop %v590
        %v623 = vrsqrt.pop %v591
        %v624 = vrsqrt.pop %v592
        %v625 = vrsqrt.pop %v593
        %v626 = vrsqrt.pop %v594
        %v627 = vrsqrt.pop %v595
        %v628 = vrsqrt.pop %v596
        %v629 = vrsqrt.pop %v597
        %v630 = vrsqrt.pop %v598
        %v631 = vrsqrt.pop %v599
        %v632 = vrsqrt.pop %v600
        %v633 = vmul.f32 %v441, %v601
        %v634 = vmul.f32 %v442, %v602
        %v635 = vmul.f32 %v443, %v603
        %v636 = vmul.f32 %v444, %v604
        %v637 = vmul.f32 %v445, %v605
        %v638 = vmul.f32 %v446, %v606
        %v639 = vmul.f32 %v447, %v607
        %v640 = vmul.f32 %v448, %v608
        %v641 = vmul.f32 %v449, %v609
        %v642 = vmul.f32 %v450, %v610
        %v643 = vmul.f32 %v451, %v611
        %v644 = vmul.f32 %v452, %v612
        %v645 = vmul.f32 %v453, %v613
        %v646 = vmul.f32 %v454, %v614
        %v647 = vmul.f32 %v455, %v615
        %v648 = vmul.f32 %v456, %v616
        %v649 = vmul.f32 %v457, %v617
        %v650 = vmul.f32 %v458, %v618
        %v651 = vmul.f32 %v459, %v619
        %v652 = vmul.f32 %v460, %v620
        %v653 = vmul.f32 %v461, %v621
        %v654 = vmul.f32 %v462, %v622
        %v655 = vmul.f32 %v463, %v623
        %v656 = vmul.f32 %v464, %v624
        %v657 = vmul.f32 %v465, %v625
        %v658 = vmul.f32 %v466, %v626
        %v659 = vmul.f32 %v467, %v627
        %v660 = vmul.f32 %v468, %v628
        %v661 = vmul.f32 %v469, %v629
        %v662 = vmul.f32 %v470, %v630
        %v663 = vmul.f32 %v471, %v631
        %v664 = vmul.f32 %v472, %v632
        %665 = vst [vmem:[%s112] sm:$0xff] %v633
        %666 = vst [vmem:[%s112 + $0x8] sm:$0xff] %v634
        %667 = vst [vmem:[%s112 + $0x10] sm:$0xff] %v635
        %668 = vst [vmem:[%s112 + $0x18] sm:$0xff] %v636
        %669 = vst [vmem:[%s112 + $0x20] sm:$0xff] %v637
        %670 = vst [vmem:[%s112 + $0x28] sm:$0xff] %v638
        %671 = vst [vmem:[%s112 + $0x30] sm:$0xff] %v639
        %672 = vst [vmem:[%s112 + $0x38] sm:$0xff] %v640
        %673 = vst [vmem:[%s112 + $0x40] sm:$0xff] %v641
        %674 = vst [vmem:[%s112 + $0x48] sm:$0xff] %v642
        %675 = vst [vmem:[%s112 + $0x50] sm:$0xff] %v643
        %676 = vst [vmem:[%s112 + $0x58] sm:$0xff] %v644
        %677 = vst [vmem:[%s112 + $0x60] sm:$0xff] %v645
        %678 = vst [vmem:[%s112 + $0x68] sm:$0xff] %v646
        %679 = vst [vmem:[%s112 + $0x70] sm:$0xff] %v647
        %680 = vst [vmem:[%s112 + $0x78] sm:$0xff] %v648
        %681 = vst [vmem:[%s112 + $0x80] sm:$0xff] %v649
        %682 = vst [vmem:[%s112 + $0x88] sm:$0xff] %v650
        %683 = vst [vmem:[%s112 + $0x90] sm:$0xff] %v651
        %684 = vst [vmem:[%s112 + $0x98] sm:$0xff] %v652
        %685 = vst [vmem:[%s112 + $0xa0] sm:$0xff] %v653
        %686 = vst [vmem:[%s112 + $0xa8] sm:$0xff] %v654
        %687 = vst [vmem:[%s112 + $0xb0] sm:$0xff] %v655
        %688 = vst [vmem:[%s112 + $0xb8] sm:$0xff] %v656
        %689 = vst [vmem:[%s112 + $0xc0] sm:$0xff] %v657
        %690 = vst [vmem:[%s112 + $0xc8] sm:$0xff] %v658
        %691 = vst [vmem:[%s112 + $0xd0] sm:$0xff] %v659
        %692 = vst [vmem:[%s112 + $0xd8] sm:$0xff] %v660
        %693 = vst [vmem:[%s112 + $0xe0] sm:$0xff] %v661
        %694 = vst [vmem:[%s112 + $0xe8] sm:$0xff] %v662
        %695 = vst [vmem:[%s112 + $0xf0] sm:$0xff] %v663
        %696 = vst [vmem:[%s112 + $0xf8] sm:$0xff] %v664
        %s697 = sand.u32 %s49, 1
        %s698 = scalar_lea.sflag [#allocation3], %s697
        %s699 = sand.u32 %s49, 1
        %s700 = smul.addr %s699, 256
        %s701 = scalar_lea.vmem [#allocation2], %s700
        // Predicated region
        $region25: #{hrm_user_forward.1} parent=23 // pred_check
          %p702 = pneg %p59
        $region26: #{hrm_user_forward.1} parent=23 // pred_check_branch
          %704 = sbr.rel (%p702) target = $region28
        $region27: #{hrm_user_forward.1} parent=23 // pred_region
          %s705 = smul.u32 32, %s15
          %s707 = ssub.s32 4096, 4096
          %708 = vsyncadd %s698, %s707
          %s709 = smul.addr %s705, 128
          %s710 = scalar_lea.hbm %s1, %s709
          %s711 = sshll.u32 %s701, 4
          %s712 = int_to_ptr.vmem [resolvable:$true] %s711
          %717 = dma.vmem_to_hbm [thread:$0]  %s712, 4096, %s710, %s698, 128, 128, 8
        $region28: #{hrm_user_forward.1} parent=23 // pred_fallthru
          _
      $region24: #{hrm_user_forward.1} parent=5 // pred_fallthru
        _
      %p718 = scmp.le.s32.totalorder 2, %s10
      // Predicated region
      $region29: #{hrm_user_forward.1} parent=5 // pred_check
        %p719 = pneg %p718
      $region30: #{hrm_user_forward.1} parent=5 // pred_check_branch
        %721 = sbr.rel (%p719) target = $region32
      $region31: #{hrm_user_forward.1} parent=5 // pred_region
        %s722 = ssub.s32 %s10, 2
        // Predicated region
        $region33: #{hrm_user_forward.1} parent=31 // pred_check
          %p723 = pneg %p65
        $region34: #{hrm_user_forward.1} parent=31 // pred_check_branch
          %725 = sbr.rel (%p723) target = $region36
        $region35: #{hrm_user_forward.1} parent=31 // pred_region
          %s726 = sand.u32 %s50, 1
          %s727 = scalar_lea.sflag [#allocation3], %s726
          %s728 = sand.u32 %s50, 1
          %s729 = smul.addr %s728, 256
          %s730 = scalar_lea.vmem [#allocation2], %s729
          %731 = dma.done %s727, 4096
        $region36: #{hrm_user_forward.1} parent=31 // pred_fallthru
          _
      $region32: #{hrm_user_forward.1} parent=5 // pred_fallthru
        _
    $region6: #{hrm_user_forward.1} parent=1 // loop_footer
      %s14 = sadd.s32 1, %s10
    $region7: #{hrm_user_forward.1} parent=1 // loop_footer_branch
      %9 = sbr.rel target = $region3
    $region8: #{hrm_user_forward.1} parent=1 // loop_exit
      _
    %732 = vsyncpa [#allocation3], 1
    %s733 = scalar_lea.sflag [#allocation3], 1
    %734 = vsyncpa %s733, 1

</llo_original>
